<compile_context>
chip_gen: v7x
topology: tpu7x:2x2x1
jax: 0.10.0
libtpu: 0.0.40
codegen_flags: <defaults>
</compile_context>

<pallas_src>
import jax
import jax.numpy as jnp
from jax import lax
from jax.experimental import pallas as pl
from jax.experimental.pallas import tpu as pltpu


def make_mlp_kernel(n_hidden):
    """[Linear]*n_hidden (chained, no activations) -> ReLU -> Linear(.,1) -> Sigmoid.

    refs = (u_ref, v_ref, w0u, w0v, b0, w1, b1, ..., w_{nh-1}, b_{nh-1}, wf_row, bf, o_ref)
    """

    def kernel(*refs):
        u_ref, v_ref = refs[0], refs[1]
        o_ref = refs[-1]
        p = refs[2:-1]

        # First hidden Linear; concat(u, v) fused via split weight: x@W0 = u@W0[:E] + v@W0[E:]
        w0u = p[0][...]
        w0v = p[1][...]
        b0 = p[2][...]                                   # (1, H0) f32
        h = (jnp.dot(u_ref[...], w0u, preferred_element_type=jnp.float32)
             + jnp.dot(v_ref[...], w0v, preferred_element_type=jnp.float32)
             + b0)

        # Remaining hidden Linears, chained with NO activation in between (matches the module)
        for i in range(1, n_hidden):
            w = p[3 + 2 * (i - 1)][...]                  # (din, dout) bf16
            b = p[3 + 2 * (i - 1) + 1][...]              # (1, dout) f32
            h = jnp.dot(h.astype(w.dtype), w, preferred_element_type=jnp.float32) + b

        # Single ReLU after the last hidden Linear
        h = jnp.maximum(h, 0.0)

        # Head: z(1, TB) = wf_row(1, H) · h(TB, H)^T  -> lane-dense output tile
        wf = p[-2][...].astype(jnp.float32)              # (1, H_last)
        bf = p[-1][...]                                  # (1, 1) f32
        z = lax.dot_general(wf, h,
                            dimension_numbers=(((1,), (1,)), ((), ())),
                            preferred_element_type=jnp.float32) + bf
        o_ref[...] = jax.nn.sigmoid(z).astype(o_ref.dtype)

    return kernel


def mlp_forward(user_idx, item_idx, params, *, tb=None, compute_dtype=jnp.bfloat16):
    """params: dict with 'user_emb', 'item_emb', 'weights' (list of (W(din,dout), b(dout,)))."""
    weights = params["weights"]
    n_hidden = len(weights) - 1
    E = params["user_emb"].shape[1]

    # Glue: embedding row gathers (cast to bf16 so the kernel reads half the bytes).
    u = params["user_emb"][user_idx].astype(compute_dtype)      # (B, E)
    v = params["item_emb"][item_idx].astype(compute_dtype)      # (B, E)
    B = u.shape[0]

    # Batch tile: lane-dense multiple of 128 when B is large, else the whole (8-rounded) batch.
    if tb is None:
        tb = 512 if B >= 512 else ((B + 7) // 8) * 8
    b_pad = ((B + tb - 1) // tb) * tb
    if b_pad != B:
        pad = b_pad - B
        u = jnp.pad(u, ((0, pad), (0, 0)))
        v = jnp.pad(v, ((0, pad), (0, 0)))
    num_tiles = b_pad // tb

    # Prepare VMEM-resident parameters: bf16 weights on the MXU path, f32 biases,
    # first weight split into user/item halves, head weight as a (1, H_last) row.
    w0, b0 = weights[0]
    flat = [
        w0[:E].astype(compute_dtype),                  # (E, H0)
        w0[E:].astype(compute_dtype),                  # (E, H0)
        b0.reshape(1, -1).astype(jnp.float32),         # (1, H0)
    ]
    for (w, b) in weights[1:-1]:
        flat.append(w.astype(compute_dtype))           # (din, dout)
        flat.append(b.reshape(1, -1).astype(jnp.float32))
    wf, bf = weights[-1]
    flat.append(wf.reshape(1, -1).astype(compute_dtype))   # (1, H_last)
    flat.append(bf.reshape(1, 1).astype(jnp.float32))      # (1, 1)

    in_specs = [
        pl.BlockSpec((tb, E), lambda i: (i, 0)),       # user tile (pipelined over batch)
        pl.BlockSpec((tb, E), lambda i: (i, 0)),       # item tile
    ]
    for arr in flat:
        # Constant index_map -> DMA'd once, resident across all batch tiles.
        in_specs.append(pl.BlockSpec(arr.shape, lambda i: (0, 0)))

    out_specs = pl.BlockSpec((1, tb), lambda i: (0, i))
    out_shape = jax.ShapeDtypeStruct((1, b_pad), jnp.float32)

    # Advisory cost estimate for the XLA scheduler.
    dims = [2 * E] + [w.shape[1] for (w, _) in weights]
    flops = 2 * B * sum(din * dout for din, dout in zip(dims[:-1], dims[1:]))
    bytes_accessed = (sum(int(a.size) * a.dtype.itemsize for a in flat)
                      + int(u.size) * u.dtype.itemsize
                      + int(v.size) * v.dtype.itemsize
                      + b_pad * 4)
    cost = pl.CostEstimate(flops=flops, transcendentals=B, bytes_accessed=bytes_accessed)

    out = pl.pallas_call(
        make_mlp_kernel(n_hidden),
        out_shape=out_shape,
        grid=(num_tiles,),
        in_specs=in_specs,
        out_specs=out_specs,
        compiler_params=pltpu.CompilerParams(
            dimension_semantics=("parallel",),
            vmem_limit_bytes=32 * 1024 * 1024,
        ),
        cost_estimate=cost,
    )(u, v, *flat)

    return out.reshape(-1)[:B]                          # .view(-1)


def mlp_reference(user_idx, item_idx, params):
    """Pure-JAX f32 reference matching the PyTorch module."""
    x = jnp.concatenate(
        [params["user_emb"][user_idx], params["item_emb"][item_idx]], axis=-1)
    ws = params["weights"]
    h = x
    for (w, b) in ws[:-1]:
        h = h @ w + b
    h = jnp.maximum(h, 0.0)
    wf, bf = ws[-1]
    return jax.nn.sigmoid(h @ wf + bf).reshape(-1)


def init_params(key, n_users, n_items, embed_dim, hidden_dim):
    keys = jax.random.split(key, 2 + 2 * (len(hidden_dim) + 1))
    user_emb = jax.random.normal(keys[0], (n_users, embed_dim), jnp.float32)
    item_emb = jax.random.normal(keys[1], (n_items, embed_dim), jnp.float32)

    dims = [embed_dim * 2] + list(hidden_dim) + [1]
    weights = []
    for i, (din, dout) in enumerate(zip(dims[:-1], dims[1:])):
        bound = 1.0 / jnp.sqrt(din)
        w = jax.random.uniform(keys[2 + 2 * i], (din, dout), jnp.float32, -bound, bound)
        b = jax.random.uniform(keys[3 + 2 * i], (dout,), jnp.float32, -bound, bound)
        weights.append((w, b))

    return {"user_emb": user_emb, "item_emb": item_emb, "weights": weights}


if __name__ == "__main__":
    n_users, n_items = 20, 30
    embed_dim = 8
    hidden_dim = [32, 16]
    batch = 8

    key = jax.random.PRNGKey(0)
    pkey, ukey, ikey = jax.random.split(key, 3)
    params = init_params(pkey, n_users, n_items, embed_dim, hidden_dim)

    user = jax.random.randint(ukey, (batch,), 0, n_users)
    item = jax.random.randint(ikey, (batch,), 0, n_items)

    out = mlp_forward(user, item, params)
    jax.block_until_ready(out)

    assert out.shape == (batch,)
    assert bool(jnp.all((out >= 0.0) & (out <= 1.0)))

    ref = mlp_reference(user, item, params)
    assert bool(jnp.all(jnp.abs(out - ref) < 5e-2)), "kernel deviates from f32 reference"

    print("KERNEL_OK")
</pallas_src>

<mosaic_0001>
module attributes {stable_mosaic.version = 11 : i64} {
  func.func @kernel(%arg0: i32, %arg1: memref<8x8xbf16, #tpu.memory_space<vmem>>, %arg2: memref<8x8xbf16, #tpu.memory_space<vmem>>, %arg3: memref<8x32xbf16, #tpu.memory_space<vmem>>, %arg4: memref<8x32xbf16, #tpu.memory_space<vmem>>, %arg5: memref<1x32xf32, #tpu.memory_space<vmem>>, %arg6: memref<32x16xbf16, #tpu.memory_space<vmem>>, %arg7: memref<1x16xf32, #tpu.memory_space<vmem>>, %arg8: memref<1x16xbf16, #tpu.memory_space<vmem>>, %arg9: memref<1x1xf32, #tpu.memory_space<vmem>>, %arg10: memref<1x8xf32, #tpu.memory_space<vmem>>) attributes {dimension_semantics = [#tpu.dimension_semantics<parallel>], iteration_bounds = array<i64: 1>, scalar_prefetch = 0 : i64, scratch_operands = 0 : i64, tpu.core_type = #tpu.core_type<tc>, window_params = [{transform_indices = @transform_0, window_bounds = array<i64: 8, 8>}, {transform_indices = @transform_1, window_bounds = array<i64: 8, 8>}, {pipeline_mode = #tpu.pipeline_mode<synchronous>, transform_indices = @transform_2, window_bounds = array<i64: 8, 32>}, {pipeline_mode = #tpu.pipeline_mode<synchronous>, transform_indices = @transform_3, window_bounds = array<i64: 8, 32>}, {pipeline_mode = #tpu.pipeline_mode<synchronous>, transform_indices = @transform_4, window_bounds = array<i64: 1, 32>}, {pipeline_mode = #tpu.pipeline_mode<synchronous>, transform_indices = @transform_5, window_bounds = array<i64: 32, 16>}, {pipeline_mode = #tpu.pipeline_mode<synchronous>, transform_indices = @transform_6, window_bounds = array<i64: 1, 16>}, {pipeline_mode = #tpu.pipeline_mode<synchronous>, transform_indices = @transform_7, window_bounds = array<i64: 1, 16>}, {pipeline_mode = #tpu.pipeline_mode<synchronous>, transform_indices = @transform_8, window_bounds = array<i64: 1, 1>}, {transform_indices = @transform_9, window_bounds = array<i64: 1, 8>}]} {
    %c0 = arith.constant 0 : index
    %c0_0 = arith.constant 0 : index
    %0 = vector.load %arg3[%c0, %c0_0] : memref<8x32xbf16, #tpu.memory_space<vmem>>, vector<8x32xbf16>
    %c0_1 = arith.constant 0 : index
    %c0_2 = arith.constant 0 : index
    %1 = vector.load %arg4[%c0_1, %c0_2] : memref<8x32xbf16, #tpu.memory_space<vmem>>, vector<8x32xbf16>
    %c0_3 = arith.constant 0 : index
    %c0_4 = arith.constant 0 : index
    %2 = vector.load %arg5[%c0_3, %c0_4] : memref<1x32xf32, #tpu.memory_space<vmem>>, vector<1x32xf32>
    %c0_5 = arith.constant 0 : index
    %c0_6 = arith.constant 0 : index
    %3 = vector.load %arg1[%c0_5, %c0_6] : memref<8x8xbf16, #tpu.memory_space<vmem>>, vector<8x8xbf16>
    %cst = arith.constant dense<0.000000e+00> : vector<8x32xf32>
    %4 = tpu.matmul %3, %0, %cst {dimension_numbers = #tpu.dot_dimension_numbers<[1], [0], [0], [1], [0, 0, 1, 1], [], []>} : vector<8x8xbf16>, vector<8x32xbf16>, vector<8x32xf32> -> vector<8x32xf32>
    %c0_7 = arith.constant 0 : index
    %c0_8 = arith.constant 0 : index
    %5 = vector.load %arg2[%c0_7, %c0_8] : memref<8x8xbf16, #tpu.memory_space<vmem>>, vector<8x8xbf16>
    %cst_9 = arith.constant dense<0.000000e+00> : vector<8x32xf32>
    %6 = tpu.matmul %5, %1, %cst_9 {dimension_numbers = #tpu.dot_dimension_numbers<[1], [0], [0], [1], [0, 0, 1, 1], [], []>} : vector<8x8xbf16>, vector<8x32xbf16>, vector<8x32xf32> -> vector<8x32xf32>
    %7 = arith.addf %4, %6 : vector<8x32xf32>
    %8 = vector.broadcast %2 : vector<1x32xf32> to vector<8x32xf32>
    %9 = arith.addf %7, %8 : vector<8x32xf32>
    %c0_10 = arith.constant 0 : index
    %c0_11 = arith.constant 0 : index
    %10 = vector.load %arg6[%c0_10, %c0_11] : memref<32x16xbf16, #tpu.memory_space<vmem>>, vector<32x16xbf16>
    %c0_12 = arith.constant 0 : index
    %c0_13 = arith.constant 0 : index
    %11 = vector.load %arg7[%c0_12, %c0_13] : memref<1x16xf32, #tpu.memory_space<vmem>>, vector<1x16xf32>
    %12 = arith.truncf %9 : vector<8x32xf32> to vector<8x32xbf16>
    %cst_14 = arith.constant dense<0.000000e+00> : vector<8x16xf32>
    %13 = tpu.matmul %12, %10, %cst_14 {dimension_numbers = #tpu.dot_dimension_numbers<[1], [0], [0], [1], [0, 0, 1, 1], [], []>} : vector<8x32xbf16>, vector<32x16xbf16>, vector<8x16xf32> -> vector<8x16xf32>
    %14 = vector.broadcast %11 : vector<1x16xf32> to vector<8x16xf32>
    %15 = arith.addf %13, %14 : vector<8x16xf32>
    %cst_15 = arith.constant 0.000000e+00 : f32
    %16 = vector.broadcast %cst_15 : f32 to vector<8x16xf32>
    %17 = arith.maximumf %15, %16 : vector<8x16xf32>
    %c0_16 = arith.constant 0 : index
    %c0_17 = arith.constant 0 : index
    %18 = vector.load %arg8[%c0_16, %c0_17] : memref<1x16xbf16, #tpu.memory_space<vmem>>, vector<1x16xbf16>
    %19 = arith.extf %18 : vector<1x16xbf16> to vector<1x16xf32>
    %c0_18 = arith.constant 0 : index
    %c0_19 = arith.constant 0 : index
    %20 = vector.load %arg9[%c0_18, %c0_19] : memref<1x1xf32, #tpu.memory_space<vmem>>, vector<1x1xf32>
    %cst_20 = arith.constant dense<0.000000e+00> : vector<1x8xf32>
    %21 = tpu.matmul %19, %17, %cst_20 {dimension_numbers = #tpu.dot_dimension_numbers<[1], [1], [0], [0], [0, 0, 1, 0], [], []>} : vector<1x16xf32>, vector<8x16xf32>, vector<1x8xf32> -> vector<1x8xf32>
    %22 = vector.broadcast %20 : vector<1x1xf32> to vector<1x8xf32>
    %23 = arith.addf %21, %22 : vector<1x8xf32>
    %24 = arith.negf %23 : vector<1x8xf32>
    %25 = math.exp %24 : vector<1x8xf32>
    %cst_21 = arith.constant 1.000000e+00 : f32
    %26 = vector.broadcast %cst_21 : f32 to vector<1x8xf32>
    %27 = arith.addf %26, %25 : vector<1x8xf32>
    %28 = arith.divf %26, %27 : vector<1x8xf32>
    %c0_22 = arith.constant 0 : index
    %c0_23 = arith.constant 0 : index
    %29 = vector.load %arg10[%c0_22, %c0_23] : memref<1x8xf32, #tpu.memory_space<vmem>>, vector<1x8xf32>
    tpu.vector_store %arg10[%c0_22, %c0_23], %28 {strides = array<i32>} : memref<1x8xf32, #tpu.memory_space<vmem>>, vector<1x8xf32>,
    return
  }
  func.func @transform_0(%arg0: i32) -> (i32, i32) {
    %c0_i32 = arith.constant 0 : i32
    %c0_i32_0 = arith.constant 0 : i32
    return %arg0, %c0_i32 : i32, i32
  }
  func.func @transform_1(%arg0: i32) -> (i32, i32) {
    %c0_i32 = arith.constant 0 : i32
    %c0_i32_0 = arith.constant 0 : i32
    return %arg0, %c0_i32 : i32, i32
  }
  func.func @transform_2(%arg0: i32) -> (i32, i32) {
    %c0_i32 = arith.constant 0 : i32
    %c0_i32_0 = arith.constant 0 : i32
    %c0_i32_1 = arith.constant 0 : i32
    return %c0_i32, %c0_i32_0 : i32, i32
  }
  func.func @transform_3(%arg0: i32) -> (i32, i32) {
    %c0_i32 = arith.constant 0 : i32
    %c0_i32_0 = arith.constant 0 : i32
    %c0_i32_1 = arith.constant 0 : i32
    return %c0_i32, %c0_i32_0 : i32, i32
  }
  func.func @transform_4(%arg0: i32) -> (i32, i32) {
    %c0_i32 = arith.constant 0 : i32
    %c0_i32_0 = arith.constant 0 : i32
    %c0_i32_1 = arith.constant 0 : i32
    return %c0_i32, %c0_i32_0 : i32, i32
  }
  func.func @transform_5(%arg0: i32) -> (i32, i32) {
    %c0_i32 = arith.constant 0 : i32
    %c0_i32_0 = arith.constant 0 : i32
    %c0_i32_1 = arith.constant 0 : i32
    return %c0_i32, %c0_i32_0 : i32, i32
  }
  func.func @transform_6(%arg0: i32) -> (i32, i32) {
    %c0_i32 = arith.constant 0 : i32
    %c0_i32_0 = arith.constant 0 : i32
    %c0_i32_1 = arith.constant 0 : i32
    return %c0_i32, %c0_i32_0 : i32, i32
  }
  func.func @transform_7(%arg0: i32) -> (i32, i32) {
    %c0_i32 = arith.constant 0 : i32
    %c0_i32_0 = arith.constant 0 : i32
    %c0_i32_1 = arith.constant 0 : i32
    return %c0_i32, %c0_i32_0 : i32, i32
  }
  func.func @transform_8(%arg0: i32) -> (i32, i32) {
    %c0_i32 = arith.constant 0 : i32
    %c0_i32_0 = arith.constant 0 : i32
    %c0_i32_1 = arith.constant 0 : i32
    return %c0_i32, %c0_i32_0 : i32, i32
  }
  func.func @transform_9(%arg0: i32) -> (i32, i32) {
    %c0_i32 = arith.constant 0 : i32
    %c0_i32_0 = arith.constant 0 : i32
    return %c0_i32, %arg0 : i32, i32
  }
}

</mosaic_0001>

<llo_original>
// kernel: tpu_custom_call.1
$region0: #{tpu_custom_call.1}
  #allocation0 [shape = 'u32[]', space=smem, size = 0x4, offset = 0x4, fixed_abs, tag = 'smem constant byte address 0x4 - core index']
  #allocation1 [shape = 'u32[144,128]{1,0:T(1,128)}', space=vmem, size = 0x12000, scoped, tag = 'internal scratch']
  #allocation2 [shape = 'f32[1,1]{1,0:T(1,128)S(1)}', space=vmem, size = 0x200, scoped, tag = 'scoped memory for tpu_custom_call.1']
  %s0 = inlined_call_operand.vmem [shape: bf16[8,8], index: 0, kind: input, shape index: {}]
  %s1 = inlined_call_operand.vmem [shape: bf16[8,8], index: 1, kind: input, shape index: {}]
  %s2 = inlined_call_operand.vmem [shape: bf16[8,32], index: 2, kind: input, shape index: {}]
  %s3 = inlined_call_operand.vmem [shape: bf16[8,32], index: 3, kind: input, shape index: {}]
  %s4 = inlined_call_operand.vmem [shape: f32[1,32], index: 4, kind: input, shape index: {}]
  %s5 = inlined_call_operand.vmem [shape: bf16[32,16], index: 5, kind: input, shape index: {}]
  %s6 = inlined_call_operand.vmem [shape: f32[1,16], index: 6, kind: input, shape index: {}]
  %s7 = inlined_call_operand.vmem [shape: bf16[1,16], index: 7, kind: input, shape index: {}]
  %s8 = inlined_call_operand.<no memory space> [shape: f32[1,1], index: 8, kind: input, shape index: {}]
  %s9 = inlined_call_operand.hbm [shape: f32[1,8], index: 9, kind: output, shape index: {}]
  %s10 = sld [smem:[#allocation0]]
  $region46: #{tpu_custom_call.1} parent=0
    _
  %s12 = ssub.s32 1, %s10
  %s13 = scalar_select 0, %s12, %s10
  %v14 = vstv %s8
  %15 = vst [vmem:[#allocation2] sm:$0x1] %v14
  $region1: #{tpu_custom_call.1} parent=0
    #allocation3 [shape = 'u8[512]{0}', space=vmem, size = 0x400, scoped, tag = 'output window, operand 0, single buffered']
    #allocation4 [shape = 's32[1]{0}', space=sflag, size = 0x4, scoped, tag = 'scoped memory for tpu_custom_call.1']
    %16 = vsyncpa [#allocation4], 0
    // Predicated region
    $region2: #{tpu_custom_call.1} parent=1 // pred_check
      _
    $region3: #{tpu_custom_call.1} parent=1 // pred_check_branch
      %18 = sbr.rel (0) target = $region5
    $region4: #{tpu_custom_call.1} parent=1 // pred_region
      _
    $region5: #{tpu_custom_call.1} parent=1 // pred_fallthru
      _
    // Predicated region
    $region6: #{tpu_custom_call.1} parent=1 // pred_check
      _
    $region7: #{tpu_custom_call.1} parent=1 // pred_check_branch
      %20 = sbr.rel (0) target = $region9
    $region8: #{tpu_custom_call.1} parent=1 // pred_region
      _
    $region9: #{tpu_custom_call.1} parent=1 // pred_fallthru
      _
    // Predicated region
    $region10: #{tpu_custom_call.1} parent=1 // pred_check
      _
    $region11: #{tpu_custom_call.1} parent=1 // pred_check_branch
      %22 = sbr.rel (0) target = $region13
    $region12: #{tpu_custom_call.1} parent=1 // pred_region
      _
    $region13: #{tpu_custom_call.1} parent=1 // pred_fallthru
      _
    // Predicated region
    $region14: #{tpu_custom_call.1} parent=1 // pred_check
      _
    $region15: #{tpu_custom_call.1} parent=1 // pred_check_branch
      %24 = sbr.rel (0) target = $region17
    $region16: #{tpu_custom_call.1} parent=1 // pred_region
      _
    $region17: #{tpu_custom_call.1} parent=1 // pred_fallthru
      _
    // Predicated region
    $region18: #{tpu_custom_call.1} parent=1 // pred_check
      _
    $region19: #{tpu_custom_call.1} parent=1 // pred_check_branch
      %26 = sbr.rel (0) target = $region21
    $region20: #{tpu_custom_call.1} parent=1 // pred_region
      _
    $region21: #{tpu_custom_call.1} parent=1 // pred_fallthru
      _
    // Predicated region
    $region22: #{tpu_custom_call.1} parent=1 // pred_check
      _
    $region23: #{tpu_custom_call.1} parent=1 // pred_check_branch
      %28 = sbr.rel (0) target = $region25
    $region24: #{tpu_custom_call.1} parent=1 // pred_region
      _
    $region25: #{tpu_custom_call.1} parent=1 // pred_fallthru
      _
    // Predicated region
    $region26: #{tpu_custom_call.1} parent=1 // pred_check
      _
    $region27: #{tpu_custom_call.1} parent=1 // pred_check_branch
      %30 = sbr.rel (0) target = $region29
    $region28: #{tpu_custom_call.1} parent=1 // pred_region
      _
    $region29: #{tpu_custom_call.1} parent=1 // pred_fallthru
      _
    // Predicated region
    $region30: #{tpu_custom_call.1} parent=1 // pred_check
      _
    $region31: #{tpu_custom_call.1} parent=1 // pred_check_branch
      %32 = sbr.rel (0) target = $region33
    $region32: #{tpu_custom_call.1} parent=1 // pred_region
      _
    $region33: #{tpu_custom_call.1} parent=1 // pred_fallthru
      _
    // Predicated region
    $region34: #{tpu_custom_call.1} parent=1 // pred_check
      _
    $region35: #{tpu_custom_call.1} parent=1 // pred_check_branch
      %34 = sbr.rel (0) target = $region37
    $region36: #{tpu_custom_call.1} parent=1 // pred_region
      _
    $region37: #{tpu_custom_call.1} parent=1 // pred_fallthru
      _
    %v36 = vld [vmem:[%s2] sm:$0xf]
    %v37 = vld [vmem:[%s3] sm:$0xf]
    %v38 = vld [vmem:[%s4] sm:$0x1]
    %v39 = vld [vmem:[%s0] sm:$0xf]
    %v40 = vld [vmem:[%s1] sm:$0xf]
    %vm41 = vcmask 64512
    %v43 = vsel %vm41, %v40, 0
    %vm45 = vcmask 1043456
    %v47 = vsel %vm45, %v37, 0
    %49 = vmatprep.subr.bf16.mxu0 0
    %50 = vmatpush1.bf16.msra.mxu0 %v47
    %51 = vmatprep.subr.bf16.mxu0 0
    %52 = vmatpush1.bf16.msra.mxu0 0
    %53 = vmatprep.subr.bf16.mxu0 0
    %54 = vmatpush1.bf16.msra.mxu0 0
    %55 = vmatprep.subr.bf16.mxu0 0
    %56 = vmatpush1.bf16.msra.mxu0 0
    %57 = vmatprep.subr.bf16.mxu0 0
    %58 = vmatpush1.bf16.msra.mxu0 0
    %59 = vmatprep.subr.bf16.mxu0 0
    %60 = vmatpush1.bf16.msra.mxu0 0
    %61 = vmatprep.subr.bf16.mxu0 0
    %62 = vmatpush1.bf16.msra.mxu0 0
    %63 = vmatprep.subr.bf16.mxu0 0
    %64 = vmatpush1.bf16.msra.mxu0 0
    %65 = vmatprep.subr.bf16.mxu0 0
    %66 = vmatpush1.bf16.msra.mxu0 0
    %67 = vmatprep.subr.bf16.mxu0 0
    %68 = vmatpush1.bf16.msra.mxu0 0
    %69 = vmatprep.subr.bf16.mxu0 0
    %70 = vmatpush1.bf16.msra.mxu0 0
    %71 = vmatprep.subr.bf16.mxu0 0
    %72 = vmatpush1.bf16.msra.mxu0 0
    %73 = vmatprep.subr.bf16.mxu0 0
    %74 = vmatpush1.bf16.msra.mxu0 0
    %75 = vmatprep.subr.bf16.mxu0 0
    %76 = vmatpush1.bf16.msra.mxu0 0
    %77 = vmatprep.subr.bf16.mxu0 0
    %78 = vmatpush1.bf16.msra.mxu0 0
    %79 = vmatprep.subr.bf16.mxu0 0
    %80 = vmatpush1.bf16.msra.mxu0 0
    %81 = vmatprep.mubr.bf16.mxu0 0
    %82 = vmatmul.mubr.bf16.gmra.mrb[0].mxu0 %v43
    %v83 = vpop.f32.mrb[0].mxu0
    %v84 = vadd.f32 0.0, %v83
    %v85 = vpop.f32.mrb[0].mxu0
    %v86 = vpop.f32.mrb[0].mxu0
    %v87 = vpop.f32.mrb[0].mxu0
    %88 = vdwg.mxu0
    %v90 = vsel %vm41, %v39, 0
    %v93 = vsel %vm45, %v36, 0
    %95 = vmatprep.subr.bf16.mxu0 0
    %96 = vmatpush1.bf16.msra.mxu0 %v93
    %97 = vmatprep.subr.bf16.mxu0 0
    %98 = vmatpush1.bf16.msra.mxu0 0
    %99 = vmatprep.subr.bf16.mxu0 0
    %100 = vmatpush1.bf16.msra.mxu0 0
    %101 = vmatprep.subr.bf16.mxu0 0
    %102 = vmatpush1.bf16.msra.mxu0 0
    %103 = vmatprep.subr.bf16.mxu0 0
    %104 = vmatpush1.bf16.msra.mxu0 0
    %105 = vmatprep.subr.bf16.mxu0 0
    %106 = vmatpush1.bf16.msra.mxu0 0
    %107 = vmatprep.subr.bf16.mxu0 0
    %108 = vmatpush1.bf16.msra.mxu0 0
    %109 = vmatprep.subr.bf16.mxu0 0
    %110 = vmatpush1.bf16.msra.mxu0 0
    %111 = vmatprep.subr.bf16.mxu0 0
    %112 = vmatpush1.bf16.msra.mxu0 0
    %113 = vmatprep.subr.bf16.mxu0 0
    %114 = vmatpush1.bf16.msra.mxu0 0
    %115 = vmatprep.subr.bf16.mxu0 0
    %116 = vmatpush1.bf16.msra.mxu0 0
    %117 = vmatprep.subr.bf16.mxu0 0
    %118 = vmatpush1.bf16.msra.mxu0 0
    %119 = vmatprep.subr.bf16.mxu0 0
    %120 = vmatpush1.bf16.msra.mxu0 0
    %121 = vmatprep.subr.bf16.mxu0 0
    %122 = vmatpush1.bf16.msra.mxu0 0
    %123 = vmatprep.subr.bf16.mxu0 0
    %124 = vmatpush1.bf16.msra.mxu0 0
    %125 = vmatprep.subr.bf16.mxu0 0
    %126 = vmatpush1.bf16.msra.mxu0 0
    %127 = vmatprep.mubr.bf16.mxu0 0
    %128 = vmatmul.mubr.bf16.gmra.mrb[0].mxu0 %v90
    %v129 = vpop.f32.mrb[0].mxu0
    %v130 = vadd.f32 %v84, %v129
    %v131 = vpop.f32.mrb[0].mxu0
    %v132 = vpop.f32.mrb[0].mxu0
    %v133 = vpop.f32.mrb[0].mxu0
    %134 = vdwg.mxu0
    %v136 = vlaneseq
    %v137 = vshrl.u32 %v136, 7
    %v138 = vsub.s32 0, %v137
    %v139 = vrot.slane %v38, %v138
    %v141 = vadd.f32 %v130, %v139
    %v142 = vld [vmem:[%s5] sm:$0xf]
    %v143 = vld [vmem:[%s5 + $0x4] sm:$0xf]
    %v144 = vld [vmem:[%s5 + $0x8] sm:$0xf]
    %v145 = vld [vmem:[%s5 + $0xc] sm:$0xf]
    %v146 = vld [vmem:[%s6] sm:$0x1]
    %v147 = vpack.c.bf16 %v141, %v141
    %v149 = vlaneseq
    %v150 = vshrl.u32 %v149, 7
    %v151 = vsub.s32 0, %v150
    %v152 = vrot.slane %v146, %v151
    %v158 = vunpack.c.l.b16 %v142
    %v159 = vunpack.c.l.b16 %v143
    %v160 = vunpack.c.l.b16 %v144
    %v161 = vunpack.c.l.b16 %v145
    %v162 = vpack.c.b16 %v159, %v158
    %v163 = vpack.c.b16 %v161, %v160
    %vm166 = vcmask 261120
    %v168 = vsel %vm166, %v147, 0
    %170 = vmatprep.subr.bf16.mxu0 0
    %171 = vmatpush1.bf16.msra.mxu0 %v162
    %172 = vmatprep.subr.bf16.mxu0 0
    %173 = vmatpush1.bf16.msra.mxu0 %v163
    %174 = vmatprep.subr.bf16.mxu0 0
    %175 = vmatpush1.bf16.msra.mxu0 0
    %176 = vmatprep.subr.bf16.mxu0 0
    %177 = vmatpush1.bf16.msra.mxu0 0
    %178 = vmatprep.subr.bf16.mxu0 0
    %179 = vmatpush1.bf16.msra.mxu0 0
    %180 = vmatprep.subr.bf16.mxu0 0
    %181 = vmatpush1.bf16.msra.mxu0 0
    %182 = vmatprep.subr.bf16.mxu0 0
    %183 = vmatpush1.bf16.msra.mxu0 0
    %184 = vmatprep.subr.bf16.mxu0 0
    %185 = vmatpush1.bf16.msra.mxu0 0
    %186 = vmatprep.subr.bf16.mxu0 0
    %187 = vmatpush1.bf16.msra.mxu0 0
    %188 = vmatprep.subr.bf16.mxu0 0
    %189 = vmatpush1.bf16.msra.mxu0 0
    %190 = vmatprep.subr.bf16.mxu0 0
    %191 = vmatpush1.bf16.msra.mxu0 0
    %192 = vmatprep.subr.bf16.mxu0 0
    %193 = vmatpush1.bf16.msra.mxu0 0
    %194 = vmatprep.subr.bf16.mxu0 0
    %195 = vmatpush1.bf16.msra.mxu0 0
    %196 = vmatprep.subr.bf16.mxu0 0
    %197 = vmatpush1.bf16.msra.mxu0 0
    %198 = vmatprep.subr.bf16.mxu0 0
    %199 = vmatpush1.bf16.msra.mxu0 0
    %200 = vmatprep.subr.bf16.mxu0 0
    %201 = vmatpush1.bf16.msra.mxu0 0
    %202 = vmatprep.mubr.bf16.mxu0 0
    %203 = vmatmul.mubr.bf16.gmra.mrb[0].mxu0 %v168
    %v204 = vpop.f32.mrb[0].mxu0
    %v205 = vadd.f32 %v152, %v204
    %v206 = vpop.f32.mrb[0].mxu0
    %v207 = vpop.f32.mrb[0].mxu0
    %v208 = vpop.f32.mrb[0].mxu0
    %209 = vdwg.mxu0
    %v210 = vmax.f32 %v205, 0.0
    %v211 = vld [vmem:[%s7] sm:$0x1]
    %v212 = vunpack.c.l.bf16 %v211
    %v213 = vld [vmem:[#allocation2] sm:$0x1]
    %215 = vset.pattern.permute.xlu0 0
    %216 = vperm.xlu0 %215, %v213
    %v217 = vpop.permute.xlu0 %216
    %v219 = vlaneseq
    %v220 = vshrl.u32 %v219, 7
    %v221 = vsub.s32 0, %v220
    %v222 = vrot.slane %v217, %v221
    %vm223 = vcmask 130048
    %v225 = vsel %vm223, %v212, 0
    %v228 = vsel %vm223, %v210, 0
    %230 = vmatprep.subr.mxu0 0.0
    %231 = vmatpush1.xpose.msra.mxu0 %v228
    %232 = vmatprep.subr.mxu0 0.0
    %233 = vmatpush1.xpose.msra.mxu0 0.0
    %234 = vmatprep.subr.mxu0 0.0
    %235 = vmatpush1.xpose.msra.mxu0 0.0
    %236 = vmatprep.subr.mxu0 0.0
    %237 = vmatpush1.xpose.msra.mxu0 0.0
    %238 = vmatprep.subr.mxu0 0.0
    %239 = vmatpush1.xpose.msra.mxu0 0.0
    %240 = vmatprep.subr.mxu0 0.0
    %241 = vmatpush1.xpose.msra.mxu0 0.0
    %242 = vmatprep.subr.mxu0 0.0
    %243 = vmatpush1.xpose.msra.mxu0 0.0
    %244 = vmatprep.subr.mxu0 0.0
    %245 = vmatpush1.xpose.msra.mxu0 0.0
    %246 = vmatprep.subr.mxu0 0.0
    %247 = vmatpush1.xpose.msra.mxu0 0.0
    %248 = vmatprep.subr.mxu0 0.0
    %249 = vmatpush1.xpose.msra.mxu0 0.0
    %250 = vmatprep.subr.mxu0 0.0
    %251 = vmatpush1.xpose.msra.mxu0 0.0
    %252 = vmatprep.subr.mxu0 0.0
    %253 = vmatpush1.xpose.msra.mxu0 0.0
    %254 = vmatprep.subr.mxu0 0.0
    %255 = vmatpush1.xpose.msra.mxu0 0.0
    %256 = vmatprep.subr.mxu0 0.0
    %257 = vmatpush1.xpose.msra.mxu0 0.0
    %258 = vmatprep.subr.mxu0 0.0
    %259 = vmatpush1.xpose.msra.mxu0 0.0
    %260 = vmatprep.subr.mxu0 0.0
    %261 = vmatpush1.xpose.msra.mxu0 0.0
    %262 = vmatprep.subr.mxu0 0.0
    %263 = vmatpush1.xpose.msra.mxu0 0.0
    %264 = vmatprep.subr.mxu0 0.0
    %265 = vmatpush1.xpose.msra.mxu0 0.0
    %266 = vmatprep.subr.mxu0 0.0
    %267 = vmatpush1.xpose.msra.mxu0 0.0
    %268 = vmatprep.subr.mxu0 0.0
    %269 = vmatpush1.xpose.msra.mxu0 0.0
    %270 = vmatprep.subr.mxu0 0.0
    %271 = vmatpush1.xpose.msra.mxu0 0.0
    %272 = vmatprep.subr.mxu0 0.0
    %273 = vmatpush1.xpose.msra.mxu0 0.0
    %274 = vmatprep.subr.mxu0 0.0
    %275 = vmatpush1.xpose.msra.mxu0 0.0
    %276 = vmatprep.subr.mxu0 0.0
    %277 = vmatpush1.xpose.msra.mxu0 0.0
    %278 = vmatprep.subr.mxu0 0.0
    %279 = vmatpush1.xpose.msra.mxu0 0.0
    %280 = vmatprep.subr.mxu0 0.0
    %281 = vmatpush1.xpose.msra.mxu0 0.0
    %282 = vmatprep.subr.mxu0 0.0
    %283 = vmatpush1.xpose.msra.mxu0 0.0
    %284 = vmatprep.subr.mxu0 0.0
    %285 = vmatpush1.xpose.msra.mxu0 0.0
    %286 = vmatprep.subr.mxu0 0.0
    %287 = vmatpush1.xpose.msra.mxu0 0.0
    %288 = vmatprep.subr.mxu0 0.0
    %289 = vmatpush1.xpose.msra.mxu0 0.0
    %290 = vmatprep.subr.mxu0 0.0
    %291 = vmatpush1.xpose.msra.mxu0 0.0
    %292 = vmatprep.subr.mxu0 0.0
    %293 = vmatpush1.xpose.msra.mxu0 0.0
    %294 = vmatprep.mubr.f32.mxu0 0.0
    %295 = vmatmul.mubr.f32.gmra.mrb[0].mxu0 %v225
    %v296 = vpop.f32.mrb[0].mxu0
    %v297 = vadd.f32 %v222, %v296
    %v298 = vpop.f32.mrb[0].mxu0
    %299 = vdwg.mxu0
    %v300 = vxor.u32 %v297, 2147483648
    %v301 = vmul.f32 %v300, 1.442695
    %v302 = vpow.pop %v301
    %v303 = vadd.f32 %v302, 1.0
    %v304 = vrcp.pop %v303
    %v305 = vmul.f32 1.0, %v304
    %vm306 = vcmask 57344
    %307 = vst.msk [vmem:[#allocation3] sm:$0x1] %vm306, %v305
    // Predicated region
    $region38: #{tpu_custom_call.1} parent=1 // pred_check
      _
    $region39: #{tpu_custom_call.1} parent=1 // pred_check_branch
      %309 = sbr.rel (0) target = $region41
    $region40: #{tpu_custom_call.1} parent=1 // pred_region
      %s311 = ssub.s32 16, 16
      %312 = vsyncadd [#allocation4], %s311
      %s314 = sshll.u32 [#allocation3], 4
      %s315 = int_to_ptr.vmem [resolvable:$true] %s314
      %317 = dma.vmem_to_hbm [thread:$0]  %s315, 16, %s9, [#allocation4]
    $region41: #{tpu_custom_call.1} parent=1 // pred_fallthru
      _
    // Predicated region
    $region42: #{tpu_custom_call.1} parent=1 // pred_check
      _
    $region43: #{tpu_custom_call.1} parent=1 // pred_check_branch
      %319 = sbr.rel (0) target = $region45
    $region44: #{tpu_custom_call.1} parent=1 // pred_region
      %320 = dma.done [#allocation4], 16
    $region45: #{tpu_custom_call.1} parent=1 // pred_fallthru
      _
    %321 = vsyncpa [#allocation4], 1

</llo_original>
